<compile_context>
chip_gen: v6e
topology: v6e:2x2x1
jax: 0.10.0
libtpu: 0.0.40
codegen_flags: <defaults>
</compile_context>

<pallas_src>
import jax
import jax.numpy as jnp
from jax.experimental import pallas as pl
from jax.experimental.pallas import tpu as pltpu

TEXT_DIM = 768
IMG_DIM = 1000          # natural lane width (equals full array dim -> legal block)
HIDDEN = 512
OUT_DIM = 2
OUT_DIM_PAD = 128       # lane-dense output, sliced back to 2 in the wrapper
SUBLANE = 16            # bf16 sublane packing minimum


def _round_up(x, m):
    return ((x + m - 1) // m) * m


# ---------------------------------------------------------------------------
# Pallas kernel: folded late-fusion head
#   out_tile = text_tile @ Wt' + img_tile @ Wi' + b'
# Shapes inside the kernel (per grid step):
#   text (TB, 768) bf16   img (TB, 1000) bf16
#   Wt'  (768, 128) bf16  Wi' (1000, 128) bf16   b' (1, 128) f32
# ---------------------------------------------------------------------------
def fusion_head_kernel(text_ref, img_ref, wt_ref, wi_ref, b_ref, out_ref):
    acc = jnp.dot(text_ref[...], wt_ref[...],
                  preferred_element_type=jnp.float32)
    acc = acc + jnp.dot(img_ref[...], wi_ref[...],
                        preferred_element_type=jnp.float32)
    out_ref[...] = (acc + b_ref[...]).astype(out_ref.dtype)


def _folded_head_jnp(text_bf16, img_bf16, params):
    """Tiny-batch fallback: same folded bf16 math, plain jnp (XLA fuses it)."""
    acc = jnp.dot(text_bf16, params["head_w_text"],
                  preferred_element_type=jnp.float32)
    acc = acc + jnp.dot(img_bf16, params["head_w_img"],
                        preferred_element_type=jnp.float32)
    return acc[:, :OUT_DIM] + params["head_b"][:, :OUT_DIM]


def late_fusion_head(text_features, image_features, params, *,
                     max_block_b=512, small_batch_threshold=32):
    """Apply the folded bert_fc/resnet_fc/fc_final head in one Pallas kernel."""
    B = text_features.shape[0]

    # bf16 activation streams; accumulation stays fp32 inside the kernel.
    text = text_features.astype(jnp.bfloat16)
    img = image_features.astype(jnp.bfloat16)
    wt = params["head_w_text"]    # (768, 128)  bf16, folded + lane-padded
    wi = params["head_w_img"]     # (1000, 128) bf16, folded + lane-padded
    bf = params["head_b"]         # (1, 128)    fp32, folded + lane-padded

    # Tiny-batch fallback: launch + padding overhead dominates below ~2 tiles.
    if B < small_batch_threshold:
        return _folded_head_jnp(text, img, params)

    # Batch tile: big enough to amortize per-step overhead, but capped at
    # ceil(B/2) so the "parallel" grid has >= 2 steps for v7x's two TCs.
    TB = min(max_block_b, _round_up(max(pl.cdiv(B, 2), SUBLANE), SUBLANE))

    # Only pad truly tiny batches up to the bf16 sublane minimum; otherwise
    # rely on the ragged last block of a cdiv grid (no extra HBM copy).
    if B < SUBLANE:
        pad = SUBLANE - B
        text = jnp.pad(text, ((0, pad), (0, 0)))
        img = jnp.pad(img, ((0, pad), (0, 0)))
    Bk = text.shape[0]

    grid = (pl.cdiv(Bk, TB),)
    out = pl.pallas_call(
        fusion_head_kernel,
        out_shape=jax.ShapeDtypeStruct((Bk, OUT_DIM_PAD), jnp.bfloat16),
        grid=grid,
        in_specs=[
            # batch-tiled activations (pipelined, ragged last block allowed)
            pl.BlockSpec((TB, TEXT_DIM), lambda i: (i, 0)),
            pl.BlockSpec((TB, IMG_DIM), lambda i: (i, 0)),
            # folded weights / bias: constant index_map -> VMEM-resident
            pl.BlockSpec((TEXT_DIM, OUT_DIM_PAD), lambda i: (0, 0)),
            pl.BlockSpec((IMG_DIM, OUT_DIM_PAD), lambda i: (0, 0)),
            pl.BlockSpec((1, OUT_DIM_PAD), lambda i: (0, 0)),
        ],
        out_specs=pl.BlockSpec((TB, OUT_DIM_PAD), lambda i: (i, 0)),
        compiler_params=pltpu.CompilerParams(
            dimension_semantics=("parallel",)),
    )(text, img, wt, wi, bf)

    return out[:B, :OUT_DIM].astype(jnp.float32)


# ---------------------------------------------------------------------------
# Parameter construction (plain JAX glue) + one-time weight folding
# ---------------------------------------------------------------------------
def fold_head_params(p):
    """Fold bert_fc/resnet_fc/fc_final into two skinny matmuls + bias (exact:
    no nonlinearity between the layers).  Weights go to bf16 and the output
    lane dim is padded 2 -> 128; NO row padding of the image weight."""
    wf_t = p["fc_final_w"][:HIDDEN, :]    # (512, 2) acts on text half
    wf_i = p["fc_final_w"][HIDDEN:, :]    # (512, 2) acts on image half

    w_text = p["bert_fc_w"] @ wf_t                                   # (768, 2)
    w_img = p["resnet_fc_w"] @ wf_i                                  # (1000, 2)
    b = p["bert_fc_b"] @ wf_t + p["resnet_fc_b"] @ wf_i + p["fc_final_b"]

    w_text = jnp.pad(w_text, ((0, 0), (0, OUT_DIM_PAD - OUT_DIM))).astype(jnp.bfloat16)
    w_img = jnp.pad(w_img, ((0, 0), (0, OUT_DIM_PAD - OUT_DIM))).astype(jnp.bfloat16)
    b = jnp.pad(b, ((0, 0), (0, OUT_DIM_PAD - OUT_DIM)))             # fp32
    return {"head_w_text": w_text, "head_w_img": w_img, "head_b": b}


def init_params(key):
    ks = jax.random.split(key, 8)
    scale = 0.02
    params = {
        # linear weights stored as (in_features, out_features)
        "bert_fc_w":   scale * jax.random.normal(ks[0], (TEXT_DIM, HIDDEN), jnp.float32),
        "bert_fc_b":   scale * jax.random.normal(ks[1], (1, HIDDEN), jnp.float32),
        "resnet_fc_w": scale * jax.random.normal(ks[2], (IMG_DIM, HIDDEN), jnp.float32),
        "resnet_fc_b": scale * jax.random.normal(ks[3], (1, HIDDEN), jnp.float32),
        "fc_final_w":  scale * jax.random.normal(ks[4], (2 * HIDDEN, OUT_DIM), jnp.float32),
        "fc_final_b":  scale * jax.random.normal(ks[5], (1, OUT_DIM), jnp.float32),
        # stub backbone parameters
        "tok_embed":   scale * jax.random.normal(ks[6], (1000, TEXT_DIM), jnp.float32),
        "img_proj":    scale * jax.random.normal(ks[7], (3, IMG_DIM), jnp.float32),
    }
    # One-time folding / padding (hoisted out of the per-call path).
    params.update(fold_head_params(params))
    return params


# TODO(synk): real DistilBERT backbone not implemented; masked mean-pooled
# token embeddings stand in for the (B, 768) pooled text features.
def stub_bert(input_ids, attention_mask, params):
    emb = params["tok_embed"][input_ids]                       # (B, S, 768)
    mask = attention_mask.astype(jnp.float32)[..., None]       # (B, S, 1)
    summed = jnp.sum(emb * mask, axis=1)
    count = jnp.maximum(jnp.sum(mask, axis=1), 1.0)
    return summed / count                                      # (B, 768)


# TODO(synk): real ResNet-34 backbone not implemented; global-average-pooled
# channels projected to 1000 dims stand in for the (B, 1000) resnet logits.
def stub_resnet(images, params):
    pooled = jnp.mean(images, axis=(2, 3))                     # (B, 3) from NCHW
    return pooled @ params["img_proj"]                         # (B, 1000)


def late_fusion_forward(input_ids, attention_mask, images, params, **head_kwargs):
    text_features = stub_bert(input_ids, attention_mask, params)    # (B, 768)
    image_features = stub_resnet(images, params)                    # (B, 1000)
    return late_fusion_head(text_features, image_features, params, **head_kwargs)


# ---------------------------------------------------------------------------
if __name__ == "__main__":
    key = jax.random.PRNGKey(0)
    k_param, k_ids, k_img, k_t2, k_i2 = jax.random.split(key, 5)

    params = init_params(k_param)

    B, S = 2, 8
    input_ids = jax.random.randint(k_ids, (B, S), 0, 1000, dtype=jnp.int32)
    attention_mask = jnp.ones((B, S), dtype=jnp.int32)
    images = jax.random.normal(k_img, (B, 3, 16, 16), jnp.float32)  # NCHW

    # Pure-JAX reference using the ORIGINAL (un-folded) fp32 two-stage head.
    tf = stub_bert(input_ids, attention_mask, params)
    imf = stub_resnet(images, params)
    t = tf @ params["bert_fc_w"] + params["bert_fc_b"]
    i = imf @ params["resnet_fc_w"] + params["resnet_fc_b"]
    ref = (jnp.concatenate([t, i], axis=1) @ params["fc_final_w"]
           + params["fc_final_b"])

    # Pallas-kernel path (forced even at tiny B).
    out = late_fusion_forward(input_ids, attention_mask, images, params,
                              small_batch_threshold=0)
    out = jax.block_until_ready(out)
    assert out.shape == (B, OUT_DIM)
    assert jnp.allclose(out, ref, atol=1e-3, rtol=2e-2)

    # Default path: tiny batch takes the plain-jnp fallback.
    out_auto = jax.block_until_ready(
        late_fusion_forward(input_ids, attention_mask, images, params))
    assert out_auto.shape == (B, OUT_DIM)
    assert jnp.allclose(out_auto, ref, atol=1e-3, rtol=2e-2)

    # Ragged multi-step grid: batch (40) not a multiple of the tile (32).
    B2 = 40
    tf2 = 0.02 * jax.random.normal(k_t2, (B2, TEXT_DIM), jnp.float32)
    imf2 = 0.02 * jax.random.normal(k_i2, (B2, IMG_DIM), jnp.float32)
    out2 = jax.block_until_ready(late_fusion_head(tf2, imf2, params))
    t2 = tf2 @ params["bert_fc_w"] + params["bert_fc_b"]
    i2 = imf2 @ params["resnet_fc_w"] + params["resnet_fc_b"]
    ref2 = (jnp.concatenate([t2, i2], axis=1) @ params["fc_final_w"]
            + params["fc_final_b"])
    assert out2.shape == (B2, OUT_DIM)
    assert jnp.allclose(out2, ref2, atol=1e-3, rtol=2e-2)

    print("KERNEL_OK")
</pallas_src>

<mosaic_0001>
module attributes {stable_mosaic.version = 11 : i64} {
  func.func @fusion_head_kernel(%arg0: i32, %arg1: memref<16x768xbf16, #tpu.memory_space<vmem>>, %arg2: memref<16x1000xbf16, #tpu.memory_space<vmem>>, %arg3: memref<768x128xbf16, #tpu.memory_space<vmem>>, %arg4: memref<1000x128xbf16, #tpu.memory_space<vmem>>, %arg5: memref<1x128xf32, #tpu.memory_space<vmem>>, %arg6: memref<16x128xbf16, #tpu.memory_space<vmem>>) attributes {dimension_semantics = [#tpu.dimension_semantics<parallel>], iteration_bounds = array<i64: 1>, scalar_prefetch = 0 : i64, scratch_operands = 0 : i64, tpu.core_type = #tpu.core_type<tc>, window_params = [{transform_indices = @transform_0, window_bounds = array<i64: 16, 768>}, {transform_indices = @transform_1, window_bounds = array<i64: 16, 1000>}, {pipeline_mode = #tpu.pipeline_mode<synchronous>, transform_indices = @transform_2, window_bounds = array<i64: 768, 128>}, {pipeline_mode = #tpu.pipeline_mode<synchronous>, transform_indices = @transform_3, window_bounds = array<i64: 1000, 128>}, {pipeline_mode = #tpu.pipeline_mode<synchronous>, transform_indices = @transform_4, window_bounds = array<i64: 1, 128>}, {transform_indices = @transform_5, window_bounds = array<i64: 16, 128>}]} {
    %c0 = arith.constant 0 : index
    %c0_0 = arith.constant 0 : index
    %0 = vector.load %arg1[%c0, %c0_0] : memref<16x768xbf16, #tpu.memory_space<vmem>>, vector<16x768xbf16>
    %c0_1 = arith.constant 0 : index
    %c0_2 = arith.constant 0 : index
    %1 = vector.load %arg3[%c0_1, %c0_2] : memref<768x128xbf16, #tpu.memory_space<vmem>>, vector<768x128xbf16>
    %cst = arith.constant dense<0.000000e+00> : vector<16x128xf32>
    %2 = tpu.matmul %0, %1, %cst {dimension_numbers = #tpu.dot_dimension_numbers<[1], [0], [0], [1], [0, 0, 1, 1], [], []>} : vector<16x768xbf16>, vector<768x128xbf16>, vector<16x128xf32> -> vector<16x128xf32>
    %c0_3 = arith.constant 0 : index
    %c0_4 = arith.constant 0 : index
    %3 = vector.load %arg2[%c0_3, %c0_4] : memref<16x1000xbf16, #tpu.memory_space<vmem>>, vector<16x1000xbf16>
    %c0_5 = arith.constant 0 : index
    %c0_6 = arith.constant 0 : index
    %4 = vector.load %arg4[%c0_5, %c0_6] : memref<1000x128xbf16, #tpu.memory_space<vmem>>, vector<1000x128xbf16>
    %cst_7 = arith.constant dense<0.000000e+00> : vector<16x128xf32>
    %5 = tpu.matmul %3, %4, %cst_7 {dimension_numbers = #tpu.dot_dimension_numbers<[1], [0], [0], [1], [0, 0, 1, 1], [], []>} : vector<16x1000xbf16>, vector<1000x128xbf16>, vector<16x128xf32> -> vector<16x128xf32>
    %6 = arith.addf %2, %5 : vector<16x128xf32>
    %c0_8 = arith.constant 0 : index
    %c0_9 = arith.constant 0 : index
    %7 = vector.load %arg5[%c0_8, %c0_9] : memref<1x128xf32, #tpu.memory_space<vmem>>, vector<1x128xf32>
    %8 = vector.broadcast %7 : vector<1x128xf32> to vector<16x128xf32>
    %9 = arith.addf %6, %8 : vector<16x128xf32>
    %10 = arith.truncf %9 : vector<16x128xf32> to vector<16x128xbf16>
    %c0_10 = arith.constant 0 : index
    %c0_11 = arith.constant 0 : index
    %11 = vector.load %arg6[%c0_10, %c0_11] : memref<16x128xbf16, #tpu.memory_space<vmem>>, vector<16x128xbf16>
    tpu.vector_store %arg6[%c0_10, %c0_11], %10 {strides = array<i32>} : memref<16x128xbf16, #tpu.memory_space<vmem>>, vector<16x128xbf16>,
    return
  }
  func.func @transform_0(%arg0: i32) -> (i32, i32) {
    %c0_i32 = arith.constant 0 : i32
    %c0_i32_0 = arith.constant 0 : i32
    return %arg0, %c0_i32 : i32, i32
  }
  func.func @transform_1(%arg0: i32) -> (i32, i32) {
    %c0_i32 = arith.constant 0 : i32
    %c0_i32_0 = arith.constant 0 : i32
    return %arg0, %c0_i32 : i32, i32
  }
  func.func @transform_2(%arg0: i32) -> (i32, i32) {
    %c0_i32 = arith.constant 0 : i32
    %c0_i32_0 = arith.constant 0 : i32
    %c0_i32_1 = arith.constant 0 : i32
    return %c0_i32, %c0_i32_0 : i32, i32
  }
  func.func @transform_3(%arg0: i32) -> (i32, i32) {
    %c0_i32 = arith.constant 0 : i32
    %c0_i32_0 = arith.constant 0 : i32
    %c0_i32_1 = arith.constant 0 : i32
    return %c0_i32, %c0_i32_0 : i32, i32
  }
  func.func @transform_4(%arg0: i32) -> (i32, i32) {
    %c0_i32 = arith.constant 0 : i32
    %c0_i32_0 = arith.constant 0 : i32
    %c0_i32_1 = arith.constant 0 : i32
    return %c0_i32, %c0_i32_0 : i32, i32
  }
  func.func @transform_5(%arg0: i32) -> (i32, i32) {
    %c0_i32 = arith.constant 0 : i32
    %c0_i32_0 = arith.constant 0 : i32
    return %arg0, %c0_i32 : i32, i32
  }
}

</mosaic_0001>

<llo_original>
// kernel: tpu_custom_call.1
$region0: #{tpu_custom_call.1}
  #allocation0 [shape = 'u32[]', space=smem, size = 0x4, offset = 0x4, fixed_abs, tag = 'smem constant byte address 0x4 - core index']
  #allocation1 [shape = 'u32[144,128]{1,0:T(1,128)}', space=vmem, size = 0x12000, scoped, tag = 'internal scratch']
  %s0 = inlined_call_operand.hbm [shape: bf16[16,768], index: 0, kind: input, shape index: {}]
  %s1 = inlined_call_operand.hbm [shape: bf16[16,1000], index: 1, kind: input, shape index: {}]
  %s2 = inlined_call_operand.hbm [shape: bf16[768,128], index: 2, kind: input, shape index: {}]
  %s3 = inlined_call_operand.hbm [shape: bf16[1000,128], index: 3, kind: input, shape index: {}]
  %s4 = inlined_call_operand.vmem [shape: f32[1,128], index: 4, kind: input, shape index: {}]
  %s5 = inlined_call_operand.hbm [shape: bf16[16,128], index: 5, kind: output, shape index: {}]
  %s6 = sld [smem:[#allocation0]]
  $region46: #{tpu_custom_call.1} parent=0
    _
  %s8 = ssub.s32 1, %s6
  %s9 = scalar_select 0, %s8, %s6
  $region1: #{tpu_custom_call.1} parent=0
    #allocation2 [shape = 'u8[24576]{0}', space=vmem, size = 0x6000, scoped, tag = 'input window, operand 0, single buffered']
    #allocation3 [shape = 's32[1]{0}', space=sflag, size = 0x4, scoped, tag = 'scoped memory for tpu_custom_call.1']
    #allocation4 [shape = 's32[1]{0}', space=sflag, size = 0x4, scoped, tag = 'scoped memory for tpu_custom_call.1']
    #allocation5 [shape = 'u8[32768]{0}', space=vmem, size = 0x8000, scoped, tag = 'input window, operand 1, single buffered']
    #allocation6 [shape = 's32[1]{0}', space=sflag, size = 0x4, scoped, tag = 'scoped memory for tpu_custom_call.1']
    #allocation7 [shape = 'u8[196608]{0}', space=vmem, size = 0x30000, scoped, tag = 'input window, operand 2, single buffered']
    #allocation8 [shape = 'u8[256000]{0}', space=vmem, size = 0x3e800, scoped, tag = 'input window, operand 3, single buffered']
    #allocation9 [shape = 's32[1]{0}', space=sflag, size = 0x4, scoped, tag = 'scoped memory for tpu_custom_call.1']
    #allocation10 [shape = 'u8[4096]{0}', space=vmem, size = 0x1000, scoped, tag = 'output window, operand 0, single buffered']
    %10 = vsyncpa [#allocation3], 0
    %11 = vsyncpa [#allocation6], 0
    %12 = vsyncpa [#allocation9], 0
    %13 = vsyncpa [#allocation4], 0
    // Predicated region
    $region2: #{tpu_custom_call.1} parent=1 // pred_check
      _
    $region3: #{tpu_custom_call.1} parent=1 // pred_check_branch
      %15 = sbr.rel (0) target = $region5
    $region4: #{tpu_custom_call.1} parent=1 // pred_region
      %s17 = ssub.s32 768, 768
      %18 = vsyncadd [#allocation3], %s17
      %s19 = sshll.u32 [#allocation2], 4
      %s20 = int_to_ptr.vmem [resolvable:$true] %s19
      %25 = dma.hbm_to_vmem [thread:$0]  %s0, 768, %s20, [#allocation3], 384, 384, 24
    $region5: #{tpu_custom_call.1} parent=1 // pred_fallthru
      _
    // Predicated region
    $region6: #{tpu_custom_call.1} parent=1 // pred_check
      _
    $region7: #{tpu_custom_call.1} parent=1 // pred_check_branch
      %27 = sbr.rel (0) target = $region9
    $region8: #{tpu_custom_call.1} parent=1 // pred_region
      %s29 = ssub.s32 1024, 1024
      %30 = vsyncadd [#allocation6], %s29
      %s31 = sshll.u32 [#allocation5], 4
      %s32 = int_to_ptr.vmem [resolvable:$true] %s31
      %37 = dma.hbm_to_vmem [thread:$0]  %s1, 1024, %s32, [#allocation6], 512, 512, 32
    $region9: #{tpu_custom_call.1} parent=1 // pred_fallthru
      _
    // Predicated region
    $region10: #{tpu_custom_call.1} parent=1 // pred_check
      _
    $region11: #{tpu_custom_call.1} parent=1 // pred_check_branch
      %39 = sbr.rel (0) target = $region13
    $region12: #{tpu_custom_call.1} parent=1 // pred_region
      %s41 = ssub.s32 6144, 6144
      %42 = vsyncadd [#allocation6], %s41
      %s43 = sshll.u32 [#allocation7], 4
      %s44 = int_to_ptr.vmem [resolvable:$true] %s43
      %49 = dma.hbm_to_vmem [thread:$0]  %s2, 6144, %s44, [#allocation6], 64, 64, 4
    $region13: #{tpu_custom_call.1} parent=1 // pred_fallthru
      _
    // Predicated region
    $region14: #{tpu_custom_call.1} parent=1 // pred_check
      _
    $region15: #{tpu_custom_call.1} parent=1 // pred_check_branch
      %51 = sbr.rel (0) target = $region17
    $region16: #{tpu_custom_call.1} parent=1 // pred_region
      %s53 = ssub.s32 8000, 8000
      %54 = vsyncadd [#allocation9], %s53
      %s55 = sshll.u32 [#allocation8], 4
      %s56 = int_to_ptr.vmem [resolvable:$true] %s55
      %61 = dma.hbm_to_vmem [thread:$0]  %s3, 8000, %s56, [#allocation9], 64, 64, 4
    $region17: #{tpu_custom_call.1} parent=1 // pred_fallthru
      _
    // Predicated region
    $region18: #{tpu_custom_call.1} parent=1 // pred_check
      _
    $region19: #{tpu_custom_call.1} parent=1 // pred_check_branch
      %63 = sbr.rel (0) target = $region21
    $region20: #{tpu_custom_call.1} parent=1 // pred_region
      _
    $region21: #{tpu_custom_call.1} parent=1 // pred_fallthru
      _
    // Predicated region
    $region22: #{tpu_custom_call.1} parent=1 // pred_check
      _
    $region23: #{tpu_custom_call.1} parent=1 // pred_check_branch
      %65 = sbr.rel (0) target = $region25
    $region24: #{tpu_custom_call.1} parent=1 // pred_region
      %66 = dma.done [#allocation3], 768
    $region25: #{tpu_custom_call.1} parent=1 // pred_fallthru
      _
    // Predicated region
    $region26: #{tpu_custom_call.1} parent=1 // pred_check
      _
    $region27: #{tpu_custom_call.1} parent=1 // pred_check_branch
      %68 = sbr.rel (0) target = $region29
    $region28: #{tpu_custom_call.1} parent=1 // pred_region
      %69 = dma.done [#allocation6], 1024
    $region29: #{tpu_custom_call.1} parent=1 // pred_fallthru
      _
    // Predicated region
    $region30: #{tpu_custom_call.1} parent=1 // pred_check
      _
    $region31: #{tpu_custom_call.1} parent=1 // pred_check_branch
      %71 = sbr.rel (0) target = $region33
    $region32: #{tpu_custom_call.1} parent=1 // pred_region
      %72 = dma.done [#allocation6], 6144
    $region33: #{tpu_custom_call.1} parent=1 // pred_fallthru
      _
    // Predicated region
    $region34: #{tpu_custom_call.1} parent=1 // pred_check
      _
    $region35: #{tpu_custom_call.1} parent=1 // pred_check_branch
      %74 = sbr.rel (0) target = $region37
    $region36: #{tpu_custom_call.1} parent=1 // pred_region
      %75 = dma.done [#allocation9], 8000
    $region37: #{tpu_custom_call.1} parent=1 // pred_fallthru
      _
    %v77 = vld [vmem:[#allocation2] sm:$0xff]
    %v78 = vld [vmem:[#allocation2 + $0x8] sm:$0xff]
    %v79 = vld [vmem:[#allocation2 + $0x10] sm:$0xff]
    %v80 = vld [vmem:[#allocation2 + $0x18] sm:$0xff]
    %v81 = vld [vmem:[#allocation2 + $0x20] sm:$0xff]
    %v82 = vld [vmem:[#allocation2 + $0x28] sm:$0xff]
    %v83 = vld [vmem:[#allocation7] sm:$0xf]
    %v84 = vld [vmem:[#allocation7 + $0x4] sm:$0xf]
    %v85 = vld [vmem:[#allocation7 + $0x8] sm:$0xf]
    %v86 = vld [vmem:[#allocation7 + $0xc] sm:$0xf]
    %v87 = vld [vmem:[#allocation7 + $0x10] sm:$0xf]
    %v88 = vld [vmem:[#allocation7 + $0x14] sm:$0xf]
    %v89 = vld [vmem:[#allocation7 + $0x18] sm:$0xf]
    %v90 = vld [vmem:[#allocation7 + $0x1c] sm:$0xf]
    %v91 = vld [vmem:[#allocation7 + $0x20] sm:$0xf]
    %v92 = vld [vmem:[#allocation7 + $0x24] sm:$0xf]
    %v93 = vld [vmem:[#allocation7 + $0x28] sm:$0xf]
    %v94 = vld [vmem:[#allocation7 + $0x2c] sm:$0xf]
    %v95 = vld [vmem:[#allocation7 + $0x30] sm:$0xf]
    %v96 = vld [vmem:[#allocation7 + $0x34] sm:$0xf]
    %v97 = vld [vmem:[#allocation7 + $0x38] sm:$0xf]
    %v98 = vld [vmem:[#allocation7 + $0x3c] sm:$0xf]
    %v99 = vld [vmem:[#allocation7 + $0x40] sm:$0xf]
    %v100 = vld [vmem:[#allocation7 + $0x44] sm:$0xf]
    %v101 = vld [vmem:[#allocation7 + $0x48] sm:$0xf]
    %v102 = vld [vmem:[#allocation7 + $0x4c] sm:$0xf]
    %v103 = vld [vmem:[#allocation7 + $0x50] sm:$0xf]
    %v104 = vld [vmem:[#allocation7 + $0x54] sm:$0xf]
    %v105 = vld [vmem:[#allocation7 + $0x58] sm:$0xf]
    %v106 = vld [vmem:[#allocation7 + $0x5c] sm:$0xf]
    %v107 = vld [vmem:[#allocation7 + $0x60] sm:$0xf]
    %v108 = vld [vmem:[#allocation7 + $0x64] sm:$0xf]
    %v109 = vld [vmem:[#allocation7 + $0x68] sm:$0xf]
    %v110 = vld [vmem:[#allocation7 + $0x6c] sm:$0xf]
    %v111 = vld [vmem:[#allocation7 + $0x70] sm:$0xf]
    %v112 = vld [vmem:[#allocation7 + $0x74] sm:$0xf]
    %v113 = vld [vmem:[#allocation7 + $0x78] sm:$0xf]
    %v114 = vld [vmem:[#allocation7 + $0x7c] sm:$0xf]
    %v115 = vld [vmem:[#allocation7 + $0x80] sm:$0xf]
    %v116 = vld [vmem:[#allocation7 + $0x84] sm:$0xf]
    %v117 = vld [vmem:[#allocation7 + $0x88] sm:$0xf]
    %v118 = vld [vmem:[#allocation7 + $0x8c] sm:$0xf]
    %v119 = vld [vmem:[#allocation7 + $0x90] sm:$0xf]
    %v120 = vld [vmem:[#allocation7 + $0x94] sm:$0xf]
    %v121 = vld [vmem:[#allocation7 + $0x98] sm:$0xf]
    %v122 = vld [vmem:[#allocation7 + $0x9c] sm:$0xf]
    %v123 = vld [vmem:[#allocation7 + $0xa0] sm:$0xf]
    %v124 = vld [vmem:[#allocation7 + $0xa4] sm:$0xf]
    %v125 = vld [vmem:[#allocation7 + $0xa8] sm:$0xf]
    %v126 = vld [vmem:[#allocation7 + $0xac] sm:$0xf]
    %v127 = vld [vmem:[#allocation7 + $0xb0] sm:$0xf]
    %v128 = vld [vmem:[#allocation7 + $0xb4] sm:$0xf]
    %v129 = vld [vmem:[#allocation7 + $0xb8] sm:$0xf]
    %v130 = vld [vmem:[#allocation7 + $0xbc] sm:$0xf]
    %v131 = vld [vmem:[#allocation7 + $0xc0] sm:$0xf]
    %v132 = vld [vmem:[#allocation7 + $0xc4] sm:$0xf]
    %v133 = vld [vmem:[#allocation7 + $0xc8] sm:$0xf]
    %v134 = vld [vmem:[#allocation7 + $0xcc] sm:$0xf]
    %v135 = vld [vmem:[#allocation7 + $0xd0] sm:$0xf]
    %v136 = vld [vmem:[#allocation7 + $0xd4] sm:$0xf]
    %v137 = vld [vmem:[#allocation7 + $0xd8] sm:$0xf]
    %v138 = vld [vmem:[#allocation7 + $0xdc] sm:$0xf]
    %v139 = vld [vmem:[#allocation7 + $0xe0] sm:$0xf]
    %v140 = vld [vmem:[#allocation7 + $0xe4] sm:$0xf]
    %v141 = vld [vmem:[#allocation7 + $0xe8] sm:$0xf]
    %v142 = vld [vmem:[#allocation7 + $0xec] sm:$0xf]
    %v143 = vld [vmem:[#allocation7 + $0xf0] sm:$0xf]
    %v144 = vld [vmem:[#allocation7 + $0xf4] sm:$0xf]
    %v145 = vld [vmem:[#allocation7 + $0xf8] sm:$0xf]
    %v146 = vld [vmem:[#allocation7 + $0xfc] sm:$0xf]
    %v147 = vld [vmem:[#allocation7 + $0x100] sm:$0xf]
    %v148 = vld [vmem:[#allocation7 + $0x104] sm:$0xf]
    %v149 = vld [vmem:[#allocation7 + $0x108] sm:$0xf]
    %v150 = vld [vmem:[#allocation7 + $0x10c] sm:$0xf]
    %v151 = vld [vmem:[#allocation7 + $0x110] sm:$0xf]
    %v152 = vld [vmem:[#allocation7 + $0x114] sm:$0xf]
    %v153 = vld [vmem:[#allocation7 + $0x118] sm:$0xf]
    %v154 = vld [vmem:[#allocation7 + $0x11c] sm:$0xf]
    %v155 = vld [vmem:[#allocation7 + $0x120] sm:$0xf]
    %v156 = vld [vmem:[#allocation7 + $0x124] sm:$0xf]
    %v157 = vld [vmem:[#allocation7 + $0x128] sm:$0xf]
    %v158 = vld [vmem:[#allocation7 + $0x12c] sm:$0xf]
    %v159 = vld [vmem:[#allocation7 + $0x130] sm:$0xf]
    %v160 = vld [vmem:[#allocation7 + $0x134] sm:$0xf]
    %v161 = vld [vmem:[#allocation7 + $0x138] sm:$0xf]
    %v162 = vld [vmem:[#allocation7 + $0x13c] sm:$0xf]
    %v163 = vld [vmem:[#allocation7 + $0x140] sm:$0xf]
    %v164 = vld [vmem:[#allocation7 + $0x144] sm:$0xf]
    %v165 = vld [vmem:[#allocation7 + $0x148] sm:$0xf]
    %v166 = vld [vmem:[#allocation7 + $0x14c] sm:$0xf]
    %v167 = vld [vmem:[#allocation7 + $0x150] sm:$0xf]
    %v168 = vld [vmem:[#allocation7 + $0x154] sm:$0xf]
    %v169 = vld [vmem:[#allocation7 + $0x158] sm:$0xf]
    %v170 = vld [vmem:[#allocation7 + $0x15c] sm:$0xf]
    %v171 = vld [vmem:[#allocation7 + $0x160] sm:$0xf]
    %v172 = vld [vmem:[#allocation7 + $0x164] sm:$0xf]
    %v173 = vld [vmem:[#allocation7 + $0x168] sm:$0xf]
    %v174 = vld [vmem:[#allocation7 + $0x16c] sm:$0xf]
    %v175 = vld [vmem:[#allocation7 + $0x170] sm:$0xf]
    %v176 = vld [vmem:[#allocation7 + $0x174] sm:$0xf]
    %v177 = vld [vmem:[#allocation7 + $0x178] sm:$0xf]
    %v178 = vld [vmem:[#allocation7 + $0x17c] sm:$0xf]
    %v179 = vld [vmem:[#allocation5] sm:$0xff]
    %v180 = vld [vmem:[#allocation5 + $0x8] sm:$0xff]
    %v181 = vld [vmem:[#allocation5 + $0x10] sm:$0xff]
    %v182 = vld [vmem:[#allocation5 + $0x18] sm:$0xff]
    %v183 = vld [vmem:[#allocation5 + $0x20] sm:$0xff]
    %v184 = vld [vmem:[#allocation5 + $0x28] sm:$0xff]
    %v185 = vld [vmem:[#allocation5 + $0x30] sm:$0xff]
    %v186 = vld [vmem:[#allocation5 + $0x38] sm:$0xff]
    %v187 = vld [vmem:[#allocation8] sm:$0xf]
    %v188 = vld [vmem:[#allocation8 + $0x4] sm:$0xf]
    %v189 = vld [vmem:[#allocation8 + $0x8] sm:$0xf]
    %v190 = vld [vmem:[#allocation8 + $0xc] sm:$0xf]
    %v191 = vld [vmem:[#allocation8 + $0x10] sm:$0xf]
    %v192 = vld [vmem:[#allocation8 + $0x14] sm:$0xf]
    %v193 = vld [vmem:[#allocation8 + $0x18] sm:$0xf]
    %v194 = vld [vmem:[#allocation8 + $0x1c] sm:$0xf]
    %v195 = vld [vmem:[#allocation8 + $0x20] sm:$0xf]
    %v196 = vld [vmem:[#allocation8 + $0x24] sm:$0xf]
    %v197 = vld [vmem:[#allocation8 + $0x28] sm:$0xf]
    %v198 = vld [vmem:[#allocation8 + $0x2c] sm:$0xf]
    %v199 = vld [vmem:[#allocation8 + $0x30] sm:$0xf]
    %v200 = vld [vmem:[#allocation8 + $0x34] sm:$0xf]
    %v201 = vld [vmem:[#allocation8 + $0x38] sm:$0xf]
    %v202 = vld [vmem:[#allocation8 + $0x3c] sm:$0xf]
    %v203 = vld [vmem:[#allocation8 + $0x40] sm:$0xf]
    %v204 = vld [vmem:[#allocation8 + $0x44] sm:$0xf]
    %v205 = vld [vmem:[#allocation8 + $0x48] sm:$0xf]
    %v206 = vld [vmem:[#allocation8 + $0x4c] sm:$0xf]
    %v207 = vld [vmem:[#allocation8 + $0x50] sm:$0xf]
    %v208 = vld [vmem:[#allocation8 + $0x54] sm:$0xf]
    %v209 = vld [vmem:[#allocation8 + $0x58] sm:$0xf]
    %v210 = vld [vmem:[#allocation8 + $0x5c] sm:$0xf]
    %v211 = vld [vmem:[#allocation8 + $0x60] sm:$0xf]
    %v212 = vld [vmem:[#allocation8 + $0x64] sm:$0xf]
    %v213 = vld [vmem:[#allocation8 + $0x68] sm:$0xf]
    %v214 = vld [vmem:[#allocation8 + $0x6c] sm:$0xf]
    %v215 = vld [vmem:[#allocation8 + $0x70] sm:$0xf]
    %v216 = vld [vmem:[#allocation8 + $0x74] sm:$0xf]
    %v217 = vld [vmem:[#allocation8 + $0x78] sm:$0xf]
    %v218 = vld [vmem:[#allocation8 + $0x7c] sm:$0xf]
    %v219 = vld [vmem:[#allocation8 + $0x80] sm:$0xf]
    %v220 = vld [vmem:[#allocation8 + $0x84] sm:$0xf]
    %v221 = vld [vmem:[#allocation8 + $0x88] sm:$0xf]
    %v222 = vld [vmem:[#allocation8 + $0x8c] sm:$0xf]
    %v223 = vld [vmem:[#allocation8 + $0x90] sm:$0xf]
    %v224 = vld [vmem:[#allocation8 + $0x94] sm:$0xf]
    %v225 = vld [vmem:[#allocation8 + $0x98] sm:$0xf]
    %v226 = vld [vmem:[#allocation8 + $0x9c] sm:$0xf]
    %v227 = vld [vmem:[#allocation8 + $0xa0] sm:$0xf]
    %v228 = vld [vmem:[#allocation8 + $0xa4] sm:$0xf]
    %v229 = vld [vmem:[#allocation8 + $0xa8] sm:$0xf]
    %v230 = vld [vmem:[#allocation8 + $0xac] sm:$0xf]
    %v231 = vld [vmem:[#allocation8 + $0xb0] sm:$0xf]
    %v232 = vld [vmem:[#allocation8 + $0xb4] sm:$0xf]
    %v233 = vld [vmem:[#allocation8 + $0xb8] sm:$0xf]
    %v234 = vld [vmem:[#allocation8 + $0xbc] sm:$0xf]
    %v235 = vld [vmem:[#allocation8 + $0xc0] sm:$0xf]
    %v236 = vld [vmem:[#allocation8 + $0xc4] sm:$0xf]
    %v237 = vld [vmem:[#allocation8 + $0xc8] sm:$0xf]
    %v238 = vld [vmem:[#allocation8 + $0xcc] sm:$0xf]
    %v239 = vld [vmem:[#allocation8 + $0xd0] sm:$0xf]
    %v240 = vld [vmem:[#allocation8 + $0xd4] sm:$0xf]
    %v241 = vld [vmem:[#allocation8 + $0xd8] sm:$0xf]
    %v242 = vld [vmem:[#allocation8 + $0xdc] sm:$0xf]
    %v243 = vld [vmem:[#allocation8 + $0xe0] sm:$0xf]
    %v244 = vld [vmem:[#allocation8 + $0xe4] sm:$0xf]
    %v245 = vld [vmem:[#allocation8 + $0xe8] sm:$0xf]
    %v246 = vld [vmem:[#allocation8 + $0xec] sm:$0xf]
    %v247 = vld [vmem:[#allocation8 + $0xf0] sm:$0xf]
    %v248 = vld [vmem:[#allocation8 + $0xf4] sm:$0xf]
    %v249 = vld [vmem:[#allocation8 + $0xf8] sm:$0xf]
    %v250 = vld [vmem:[#allocation8 + $0xfc] sm:$0xf]
    %v251 = vld [vmem:[#allocation8 + $0x100] sm:$0xf]
    %v252 = vld [vmem:[#allocation8 + $0x104] sm:$0xf]
    %v253 = vld [vmem:[#allocation8 + $0x108] sm:$0xf]
    %v254 = vld [vmem:[#allocation8 + $0x10c] sm:$0xf]
    %v255 = vld [vmem:[#allocation8 + $0x110] sm:$0xf]
    %v256 = vld [vmem:[#allocation8 + $0x114] sm:$0xf]
    %v257 = vld [vmem:[#allocation8 + $0x118] sm:$0xf]
    %v258 = vld [vmem:[#allocation8 + $0x11c] sm:$0xf]
    %v259 = vld [vmem:[#allocation8 + $0x120] sm:$0xf]
    %v260 = vld [vmem:[#allocation8 + $0x124] sm:$0xf]
    %v261 = vld [vmem:[#allocation8 + $0x128] sm:$0xf]
    %v262 = vld [vmem:[#allocation8 + $0x12c] sm:$0xf]
    %v263 = vld [vmem:[#allocation8 + $0x130] sm:$0xf]
    %v264 = vld [vmem:[#allocation8 + $0x134] sm:$0xf]
    %v265 = vld [vmem:[#allocation8 + $0x138] sm:$0xf]
    %v266 = vld [vmem:[#allocation8 + $0x13c] sm:$0xf]
    %v267 = vld [vmem:[#allocation8 + $0x140] sm:$0xf]
    %v268 = vld [vmem:[#allocation8 + $0x144] sm:$0xf]
    %v269 = vld [vmem:[#allocation8 + $0x148] sm:$0xf]
    %v270 = vld [vmem:[#allocation8 + $0x14c] sm:$0xf]
    %v271 = vld [vmem:[#allocation8 + $0x150] sm:$0xf]
    %v272 = vld [vmem:[#allocation8 + $0x154] sm:$0xf]
    %v273 = vld [vmem:[#allocation8 + $0x158] sm:$0xf]
    %v274 = vld [vmem:[#allocation8 + $0x15c] sm:$0xf]
    %v275 = vld [vmem:[#allocation8 + $0x160] sm:$0xf]
    %v276 = vld [vmem:[#allocation8 + $0x164] sm:$0xf]
    %v277 = vld [vmem:[#allocation8 + $0x168] sm:$0xf]
    %v278 = vld [vmem:[#allocation8 + $0x16c] sm:$0xf]
    %v279 = vld [vmem:[#allocation8 + $0x170] sm:$0xf]
    %v280 = vld [vmem:[#allocation8 + $0x174] sm:$0xf]
    %v281 = vld [vmem:[#allocation8 + $0x178] sm:$0xf]
    %v282 = vld [vmem:[#allocation8 + $0x17c] sm:$0xf]
    %v283 = vld [vmem:[#allocation8 + $0x180] sm:$0xf]
    %v284 = vld [vmem:[#allocation8 + $0x184] sm:$0xf]
    %v285 = vld [vmem:[#allocation8 + $0x188] sm:$0xf]
    %v286 = vld [vmem:[#allocation8 + $0x18c] sm:$0xf]
    %v287 = vld [vmem:[#allocation8 + $0x190] sm:$0xf]
    %v288 = vld [vmem:[#allocation8 + $0x194] sm:$0xf]
    %v289 = vld [vmem:[#allocation8 + $0x198] sm:$0xf]
    %v290 = vld [vmem:[#allocation8 + $0x19c] sm:$0xf]
    %v291 = vld [vmem:[#allocation8 + $0x1a0] sm:$0xf]
    %v292 = vld [vmem:[#allocation8 + $0x1a4] sm:$0xf]
    %v293 = vld [vmem:[#allocation8 + $0x1a8] sm:$0xf]
    %v294 = vld [vmem:[#allocation8 + $0x1ac] sm:$0xf]
    %v295 = vld [vmem:[#allocation8 + $0x1b0] sm:$0xf]
    %v296 = vld [vmem:[#allocation8 + $0x1b4] sm:$0xf]
    %v297 = vld [vmem:[#allocation8 + $0x1b8] sm:$0xf]
    %v298 = vld [vmem:[#allocation8 + $0x1bc] sm:$0xf]
    %v299 = vld [vmem:[#allocation8 + $0x1c0] sm:$0xf]
    %v300 = vld [vmem:[#allocation8 + $0x1c4] sm:$0xf]
    %v301 = vld [vmem:[#allocation8 + $0x1c8] sm:$0xf]
    %v302 = vld [vmem:[#allocation8 + $0x1cc] sm:$0xf]
    %v303 = vld [vmem:[#allocation8 + $0x1d0] sm:$0xf]
    %v304 = vld [vmem:[#allocation8 + $0x1d4] sm:$0xf]
    %v305 = vld [vmem:[#allocation8 + $0x1d8] sm:$0xf]
    %v306 = vld [vmem:[#allocation8 + $0x1dc] sm:$0xf]
    %v307 = vld [vmem:[#allocation8 + $0x1e0] sm:$0xf]
    %v308 = vld [vmem:[#allocation8 + $0x1e4] sm:$0xf]
    %v309 = vld [vmem:[#allocation8 + $0x1e8] sm:$0xf]
    %v310 = vld [vmem:[#allocation8 + $0x1ec] sm:$0xf]
    %v311 = vld [vmem:[#allocation8 + $0x1f0] sm:$0xf]
    %v320 = vunpack.c.l.b16 %v179
    %v321 = vunpack.c.h.b16 %v179
    %v322 = vunpack.c.l.b16 %v180
    %v323 = vunpack.c.h.b16 %v180
    %v324 = vunpack.c.l.b16 %v181
    %v325 = vunpack.c.h.b16 %v181
    %v326 = vunpack.c.l.b16 %v182
    %v327 = vunpack.c.h.b16 %v182
    %v328 = vunpack.c.l.b16 %v183
    %v329 = vunpack.c.h.b16 %v183
    %v330 = vunpack.c.l.b16 %v184
    %v331 = vunpack.c.h.b16 %v184
    %v332 = vunpack.c.l.b16 %v185
    %v333 = vunpack.c.h.b16 %v185
    %v334 = vunpack.c.l.b16 %v186
    %v335 = vunpack.c.h.b16 %v186
    %v336 = vpack.c.b16 %v328, %v320
    %v337 = vpack.c.b16 %v329, %v321
    %v338 = vpack.c.b16 %v330, %v322
    %v339 = vpack.c.b16 %v331, %v323
    %v340 = vpack.c.b16 %v332, %v324
    %v341 = vpack.c.b16 %v333, %v325
    %v342 = vpack.c.b16 %v334, %v326
    %v343 = vpack.c.b16 %v335, %v327
    %v476 = vunpack.c.l.b16 %v187
    %v477 = vunpack.c.l.b16 %v188
    %v478 = vunpack.c.l.b16 %v189
    %v479 = vunpack.c.l.b16 %v190
    %v480 = vunpack.c.l.b16 %v191
    %v481 = vunpack.c.l.b16 %v192
    %v482 = vunpack.c.l.b16 %v193
    %v483 = vunpack.c.l.b16 %v194
    %v484 = vunpack.c.l.b16 %v195
    %v485 = vunpack.c.l.b16 %v196
    %v486 = vunpack.c.l.b16 %v197
    %v487 = vunpack.c.l.b16 %v198
    %v488 = vunpack.c.l.b16 %v199
    %v489 = vunpack.c.l.b16 %v200
    %v490 = vunpack.c.l.b16 %v201
    %v491 = vunpack.c.l.b16 %v202
    %v492 = vunpack.c.l.b16 %v203
    %v493 = vunpack.c.l.b16 %v204
    %v494 = vunpack.c.l.b16 %v205
    %v495 = vunpack.c.l.b16 %v206
    %v496 = vunpack.c.l.b16 %v207
    %v497 = vunpack.c.l.b16 %v208
    %v498 = vunpack.c.l.b16 %v209
    %v499 = vunpack.c.l.b16 %v210
    %v500 = vunpack.c.l.b16 %v211
    %v501 = vunpack.c.l.b16 %v212
    %v502 = vunpack.c.l.b16 %v213
    %v503 = vunpack.c.l.b16 %v214
    %v504 = vunpack.c.l.b16 %v215
    %v505 = vunpack.c.l.b16 %v216
    %v506 = vunpack.c.l.b16 %v217
    %v507 = vunpack.c.l.b16 %v218
    %v508 = vunpack.c.l.b16 %v219
    %v509 = vunpack.c.l.b16 %v220
    %v510 = vunpack.c.l.b16 %v221
    %v511 = vunpack.c.l.b16 %v222
    %v512 = vunpack.c.l.b16 %v223
    %v513 = vunpack.c.l.b16 %v224
    %v514 = vunpack.c.l.b16 %v225
    %v515 = vunpack.c.l.b16 %v226
    %v516 = vunpack.c.l.b16 %v227
    %v517 = vunpack.c.l.b16 %v228
    %v518 = vunpack.c.l.b16 %v229
    %v519 = vunpack.c.l.b16 %v230
    %v520 = vunpack.c.l.b16 %v231
    %v521 = vunpack.c.l.b16 %v232
    %v522 = vunpack.c.l.b16 %v233
    %v523 = vunpack.c.l.b16 %v234
    %v524 = vunpack.c.l.b16 %v235
    %v525 = vunpack.c.l.b16 %v236
    %v526 = vunpack.c.l.b16 %v237
    %v527 = vunpack.c.l.b16 %v238
    %v528 = vunpack.c.l.b16 %v239
    %v529 = vunpack.c.l.b16 %v240
    %v530 = vunpack.c.l.b16 %v241
    %v531 = vunpack.c.l.b16 %v242
    %v532 = vunpack.c.l.b16 %v243
    %v533 = vunpack.c.l.b16 %v244
    %v534 = vunpack.c.l.b16 %v245
    %v535 = vunpack.c.l.b16 %v246
    %v536 = vunpack.c.l.b16 %v247
    %v537 = vunpack.c.l.b16 %v248
    %v538 = vunpack.c.l.b16 %v249
    %v539 = vunpack.c.l.b16 %v250
    %v540 = vunpack.c.l.b16 %v251
    %v541 = vunpack.c.l.b16 %v252
    %v542 = vunpack.c.l.b16 %v253
    %v543 = vunpack.c.l.b16 %v254
    %v544 = vunpack.c.l.b16 %v255
    %v545 = vunpack.c.l.b16 %v256
    %v546 = vunpack.c.l.b16 %v257
    %v547 = vunpack.c.l.b16 %v258
    %v548 = vunpack.c.l.b16 %v259
    %v549 = vunpack.c.l.b16 %v260
    %v550 = vunpack.c.l.b16 %v261
    %v551 = vunpack.c.l.b16 %v262
    %v552 = vunpack.c.l.b16 %v263
    %v553 = vunpack.c.l.b16 %v264
    %v554 = vunpack.c.l.b16 %v265
    %v555 = vunpack.c.l.b16 %v266
    %v556 = vunpack.c.l.b16 %v267
    %v557 = vunpack.c.l.b16 %v268
    %v558 = vunpack.c.l.b16 %v269
    %v559 = vunpack.c.l.b16 %v270
    %v560 = vunpack.c.l.b16 %v271
    %v561 = vunpack.c.l.b16 %v272
    %v562 = vunpack.c.l.b16 %v273
    %v563 = vunpack.c.l.b16 %v274
    %v564 = vunpack.c.l.b16 %v275
    %v565 = vunpack.c.l.b16 %v276
    %v566 = vunpack.c.l.b16 %v277
    %v567 = vunpack.c.l.b16 %v278
    %v568 = vunpack.c.l.b16 %v279
    %v569 = vunpack.c.l.b16 %v280
    %v570 = vunpack.c.l.b16 %v281
    %v571 = vunpack.c.l.b16 %v282
    %v572 = vunpack.c.l.b16 %v283
    %v573 = vunpack.c.l.b16 %v284
    %v574 = vunpack.c.l.b16 %v285
    %v575 = vunpack.c.l.b16 %v286
    %v576 = vunpack.c.l.b16 %v287
    %v577 = vunpack.c.l.b16 %v288
    %v578 = vunpack.c.l.b16 %v289
    %v579 = vunpack.c.l.b16 %v290
    %v580 = vunpack.c.l.b16 %v291
    %v581 = vunpack.c.l.b16 %v292
    %v582 = vunpack.c.l.b16 %v293
    %v583 = vunpack.c.l.b16 %v294
    %v584 = vunpack.c.l.b16 %v295
    %v585 = vunpack.c.l.b16 %v296
    %v586 = vunpack.c.l.b16 %v297
    %v587 = vunpack.c.l.b16 %v298
    %v588 = vunpack.c.l.b16 %v299
    %v589 = vunpack.c.l.b16 %v300
    %v590 = vunpack.c.l.b16 %v301
    %v591 = vunpack.c.l.b16 %v302
    %v592 = vunpack.c.l.b16 %v303
    %v593 = vunpack.c.l.b16 %v304
    %v594 = vunpack.c.l.b16 %v305
    %v595 = vunpack.c.l.b16 %v306
    %v596 = vunpack.c.l.b16 %v307
    %v597 = vunpack.c.l.b16 %v308
    %v598 = vunpack.c.l.b16 %v309
    %v599 = vunpack.c.l.b16 %v310
    %v600 = vunpack.c.l.b16 %v311
    %v601 = vpack.c.b16 %v477, %v476
    %v602 = vpack.c.b16 %v479, %v478
    %v603 = vpack.c.b16 %v481, %v480
    %v604 = vpack.c.b16 %v483, %v482
    %v605 = vpack.c.b16 %v485, %v484
    %v606 = vpack.c.b16 %v487, %v486
    %v607 = vpack.c.b16 %v489, %v488
    %v608 = vpack.c.b16 %v491, %v490
    %v609 = vpack.c.b16 %v493, %v492
    %v610 = vpack.c.b16 %v495, %v494
    %v611 = vpack.c.b16 %v497, %v496
    %v612 = vpack.c.b16 %v499, %v498
    %v613 = vpack.c.b16 %v501, %v500
    %v614 = vpack.c.b16 %v503, %v502
    %v615 = vpack.c.b16 %v505, %v504
    %v616 = vpack.c.b16 %v507, %v506
    %v617 = vpack.c.b16 %v509, %v508
    %v618 = vpack.c.b16 %v511, %v510
    %v619 = vpack.c.b16 %v513, %v512
    %v620 = vpack.c.b16 %v515, %v514
    %v621 = vpack.c.b16 %v517, %v516
    %v622 = vpack.c.b16 %v519, %v518
    %v623 = vpack.c.b16 %v521, %v520
    %v624 = vpack.c.b16 %v523, %v522
    %v625 = vpack.c.b16 %v525, %v524
    %v626 = vpack.c.b16 %v527, %v526
    %v627 = vpack.c.b16 %v529, %v528
    %v628 = vpack.c.b16 %v531, %v530
    %v629 = vpack.c.b16 %v533, %v532
    %v630 = vpack.c.b16 %v535, %v534
    %v631 = vpack.c.b16 %v537, %v536
    %v632 = vpack.c.b16 %v539, %v538
    %v633 = vpack.c.b16 %v541, %v540
    %v634 = vpack.c.b16 %v543, %v542
    %v635 = vpack.c.b16 %v545, %v544
    %v636 = vpack.c.b16 %v547, %v546
    %v637 = vpack.c.b16 %v549, %v548
    %v638 = vpack.c.b16 %v551, %v550
    %v639 = vpack.c.b16 %v553, %v552
    %v640 = vpack.c.b16 %v555, %v554
    %v641 = vpack.c.b16 %v557, %v556
    %v642 = vpack.c.b16 %v559, %v558
    %v643 = vpack.c.b16 %v561, %v560
    %v644 = vpack.c.b16 %v563, %v562
    %v645 = vpack.c.b16 %v565, %v564
    %v646 = vpack.c.b16 %v567, %v566
    %v647 = vpack.c.b16 %v569, %v568
    %v648 = vpack.c.b16 %v571, %v570
    %v649 = vpack.c.b16 %v573, %v572
    %v650 = vpack.c.b16 %v575, %v574
    %v651 = vpack.c.b16 %v577, %v576
    %v652 = vpack.c.b16 %v579, %v578
    %v653 = vpack.c.b16 %v581, %v580
    %v654 = vpack.c.b16 %v583, %v582
    %v655 = vpack.c.b16 %v585, %v584
    %v656 = vpack.c.b16 %v587, %v586
    %v657 = vpack.c.b16 %v589, %v588
    %v658 = vpack.c.b16 %v591, %v590
    %v659 = vpack.c.b16 %v593, %v592
    %v660 = vpack.c.b16 %v595, %v594
    %v661 = vpack.c.b16 %v597, %v596
    %v662 = vpack.c.b16 %v599, %v598
    %v663 = vpack.c.b16 %v600, %v600
    %vm726 = vcmask 850944
    %v728 = vsel %vm726, %v343, 0
    %vm730 = vcmask 1043456
    %v732 = vsel %vm730, %v663, 0
    %734 = vmatprep.subr.bf16.mxu0 0
    %735 = vmatpush1.bf16.msra.mxu0 %v608
    %736 = vmatprep.subr.bf16.mxu0 0
    %737 = vmatpush1.bf16.msra.mxu0 %v607
    %738 = vmatprep.subr.bf16.mxu0 0
    %739 = vmatpush1.bf16.msra.mxu0 %v606
    %740 = vmatprep.subr.bf16.mxu0 0
    %741 = vmatpush1.bf16.msra.mxu0 %v605
    %742 = vmatprep.subr.bf16.mxu0 0
    %743 = vmatpush1.bf16.msra.mxu0 %v604
    %744 = vmatprep.subr.bf16.mxu0 0
    %745 = vmatpush1.bf16.msra.mxu0 %v603
    %746 = vmatprep.subr.bf16.mxu0 0
    %747 = vmatpush1.bf16.msra.mxu0 %v602
    %748 = vmatprep.subr.bf16.mxu0 0
    %749 = vmatpush1.bf16.msra.mxu0 %v601
    %750 = vmatprep.subr.bf16.mxu0 0
    %751 = vmatpush2.bf16.msra.mxu0 %v616
    %752 = vmatprep.subr.bf16.mxu0 0
    %753 = vmatpush2.bf16.msra.mxu0 %v615
    %754 = vmatprep.subr.bf16.mxu0 0
    %755 = vmatpush2.bf16.msra.mxu0 %v614
    %756 = vmatprep.subr.bf16.mxu0 0
    %757 = vmatpush2.bf16.msra.mxu0 %v613
    %758 = vmatprep.subr.bf16.mxu0 0
    %759 = vmatpush2.bf16.msra.mxu0 %v612
    %760 = vmatprep.subr.bf16.mxu0 0
    %761 = vmatpush2.bf16.msra.mxu0 %v611
    %762 = vmatprep.subr.bf16.mxu0 0
    %763 = vmatpush2.bf16.msra.mxu0 %v610
    %764 = vmatprep.subr.bf16.mxu0 0
    %765 = vmatpush2.bf16.msra.mxu0 %v609
    %766 = vmatprep.mubr.bf16.mxu0 %v337
    %767 = vmatmul.mubr.bf16.gmra.mxu0 %v336
    %v768 = vpop.f32.mrf.mxu0
    %v769 = vadd.f32 0.0, %v768
    %v770 = vpop.f32.mrf.mxu0
    %v771 = vpop.f32.mrf.mxu0
    %v772 = vadd.f32 0.0, %v771
    %v773 = vpop.f32.mrf.mxu0
    %774 = vdwg.mxu0
    %775 = vmatprep.subr.bf16.mxu0 0
    %776 = vmatpush1.bf16.msra.mxu0 %v624
    %777 = vmatprep.subr.bf16.mxu0 0
    %778 = vmatpush1.bf16.msra.mxu0 %v623
    %779 = vmatprep.subr.bf16.mxu0 0
    %780 = vmatpush1.bf16.msra.mxu0 %v622
    %781 = vmatprep.subr.bf16.mxu0 0
    %782 = vmatpush1.bf16.msra.mxu0 %v621
    %783 = vmatprep.subr.bf16.mxu0 0
    %784 = vmatpush1.bf16.msra.mxu0 %v620
    %785 = vmatprep.subr.bf16.mxu0 0
    %786 = vmatpush1.bf16.msra.mxu0 %v619
    %787 = vmatprep.subr.bf16.mxu0 0
    %788 = vmatpush1.bf16.msra.mxu0 %v618
    %789 = vmatprep.subr.bf16.mxu0 0
    %790 = vmatpush1.bf16.msra.mxu0 %v617
    %791 = vmatprep.subr.bf16.mxu0 0
    %792 = vmatpush2.bf16.msra.mxu0 %v632
    %793 = vmatprep.subr.bf16.mxu0 0
    %794 = vmatpush2.bf16.msra.mxu0 %v631
    %795 = vmatprep.subr.bf16.mxu0 0
    %796 = vmatpush2.bf16.msra.mxu0 %v630
    %797 = vmatprep.subr.bf16.mxu0 0
    %798 = vmatpush2.bf16.msra.mxu0 %v629
    %799 = vmatprep.subr.bf16.mxu0 0
    %800 = vmatpush2.bf16.msra.mxu0 %v628
    %801 = vmatprep.subr.bf16.mxu0 0
    %802 = vmatpush2.bf16.msra.mxu0 %v627
    %803 = vmatprep.subr.bf16.mxu0 0
    %804 = vmatpush2.bf16.msra.mxu0 %v626
    %805 = vmatprep.subr.bf16.mxu0 0
    %806 = vmatpush2.bf16.msra.mxu0 %v625
    %807 = vmatprep.mubr.bf16.mxu0 %v339
    %808 = vmatmul.mubr.bf16.gmra.mxu0 %v338
    %v809 = vpop.f32.mrf.mxu0
    %v810 = vadd.f32 %v769, %v809
    %v811 = vpop.f32.mrf.mxu0
    %v812 = vpop.f32.mrf.mxu0
    %v813 = vadd.f32 %v772, %v812
    %v814 = vpop.f32.mrf.mxu0
    %815 = vdwg.mxu0
    %816 = vmatprep.subr.bf16.mxu0 0
    %817 = vmatpush1.bf16.msra.mxu0 %v640
    %818 = vmatprep.subr.bf16.mxu0 0
    %819 = vmatpush1.bf16.msra.mxu0 %v639
    %820 = vmatprep.subr.bf16.mxu0 0
    %821 = vmatpush1.bf16.msra.mxu0 %v638
    %822 = vmatprep.subr.bf16.mxu0 0
    %823 = vmatpush1.bf16.msra.mxu0 %v637
    %824 = vmatprep.subr.bf16.mxu0 0
    %825 = vmatpush1.bf16.msra.mxu0 %v636
    %826 = vmatprep.subr.bf16.mxu0 0
    %827 = vmatpush1.bf16.msra.mxu0 %v635
    %828 = vmatprep.subr.bf16.mxu0 0
    %829 = vmatpush1.bf16.msra.mxu0 %v634
    %830 = vmatprep.subr.bf16.mxu0 0
    %831 = vmatpush1.bf16.msra.mxu0 %v633
    %832 = vmatprep.subr.bf16.mxu0 0
    %833 = vmatpush2.bf16.msra.mxu0 %v648
    %834 = vmatprep.subr.bf16.mxu0 0
    %835 = vmatpush2.bf16.msra.mxu0 %v647
    %836 = vmatprep.subr.bf16.mxu0 0
    %837 = vmatpush2.bf16.msra.mxu0 %v646
    %838 = vmatprep.subr.bf16.mxu0 0
    %839 = vmatpush2.bf16.msra.mxu0 %v645
    %840 = vmatprep.subr.bf16.mxu0 0
    %841 = vmatpush2.bf16.msra.mxu0 %v644
    %842 = vmatprep.subr.bf16.mxu0 0
    %843 = vmatpush2.bf16.msra.mxu0 %v643
    %844 = vmatprep.subr.bf16.mxu0 0
    %845 = vmatpush2.bf16.msra.mxu0 %v642
    %846 = vmatprep.subr.bf16.mxu0 0
    %847 = vmatpush2.bf16.msra.mxu0 %v641
    %848 = vmatprep.mubr.bf16.mxu0 %v341
    %849 = vmatmul.mubr.bf16.gmra.mxu0 %v340
    %v850 = vpop.f32.mrf.mxu0
    %v851 = vadd.f32 %v810, %v850
    %v852 = vpop.f32.mrf.mxu0
    %v853 = vpop.f32.mrf.mxu0
    %v854 = vadd.f32 %v813, %v853
    %v855 = vpop.f32.mrf.mxu0
    %856 = vdwg.mxu0
    %857 = vmatprep.subr.bf16.mxu0 0
    %858 = vmatpush1.bf16.msra.mxu0 %v656
    %859 = vmatprep.subr.bf16.mxu0 0
    %860 = vmatpush1.bf16.msra.mxu0 %v655
    %861 = vmatprep.subr.bf16.mxu0 0
    %862 = vmatpush1.bf16.msra.mxu0 %v654
    %863 = vmatprep.subr.bf16.mxu0 0
    %864 = vmatpush1.bf16.msra.mxu0 %v653
    %865 = vmatprep.subr.bf16.mxu0 0
    %866 = vmatpush1.bf16.msra.mxu0 %v652
    %867 = vmatprep.subr.bf16.mxu0 0
    %868 = vmatpush1.bf16.msra.mxu0 %v651
    %869 = vmatprep.subr.bf16.mxu0 0
    %870 = vmatpush1.bf16.msra.mxu0 %v650
    %871 = vmatprep.subr.bf16.mxu0 0
    %872 = vmatpush1.bf16.msra.mxu0 %v649
    %873 = vmatprep.subr.bf16.mxu0 0
    %874 = vmatpush2.bf16.msra.mxu0 0
    %875 = vmatprep.subr.bf16.mxu0 0
    %876 = vmatpush2.bf16.msra.mxu0 %v732
    %877 = vmatprep.subr.bf16.mxu0 0
    %878 = vmatpush2.bf16.msra.mxu0 %v662
    %879 = vmatprep.subr.bf16.mxu0 0
    %880 = vmatpush2.bf16.msra.mxu0 %v661
    %881 = vmatprep.subr.bf16.mxu0 0
    %882 = vmatpush2.bf16.msra.mxu0 %v660
    %883 = vmatprep.subr.bf16.mxu0 0
    %884 = vmatpush2.bf16.msra.mxu0 %v659
    %885 = vmatprep.subr.bf16.mxu0 0
    %886 = vmatpush2.bf16.msra.mxu0 %v658
    %887 = vmatprep.subr.bf16.mxu0 0
    %888 = vmatpush2.bf16.msra.mxu0 %v657
    %889 = vmatprep.mubr.bf16.mxu0 %v728
    %890 = vmatmul.mubr.bf16.gmra.mxu0 %v342
    %v891 = vpop.f32.mrf.mxu0
    %v892 = vadd.f32 %v851, %v891
    %v893 = vpop.f32.mrf.mxu0
    %v894 = vpop.f32.mrf.mxu0
    %v895 = vadd.f32 %v854, %v894
    %v896 = vpop.f32.mrf.mxu0
    %897 = vdwg.mxu0
    %v904 = vunpack.c.l.b16 %v77
    %v905 = vunpack.c.h.b16 %v77
    %v906 = vunpack.c.l.b16 %v78
    %v907 = vunpack.c.h.b16 %v78
    %v908 = vunpack.c.l.b16 %v79
    %v909 = vunpack.c.h.b16 %v79
    %v910 = vunpack.c.l.b16 %v80
    %v911 = vunpack.c.h.b16 %v80
    %v912 = vunpack.c.l.b16 %v81
    %v913 = vunpack.c.h.b16 %v81
    %v914 = vunpack.c.l.b16 %v82
    %v915 = vunpack.c.h.b16 %v82
    %v916 = vpack.c.b16 %v910, %v904
    %v917 = vpack.c.b16 %v911, %v905
    %v918 = vpack.c.b16 %v912, %v906
    %v919 = vpack.c.b16 %v913, %v907
    %v920 = vpack.c.b16 %v914, %v908
    %v921 = vpack.c.b16 %v915, %v909
    %v1024 = vunpack.c.l.b16 %v83
    %v1025 = vunpack.c.l.b16 %v84
    %v1026 = vunpack.c.l.b16 %v85
    %v1027 = vunpack.c.l.b16 %v86
    %v1028 = vunpack.c.l.b16 %v87
    %v1029 = vunpack.c.l.b16 %v88
    %v1030 = vunpack.c.l.b16 %v89
    %v1031 = vunpack.c.l.b16 %v90
    %v1032 = vunpack.c.l.b16 %v91
    %v1033 = vunpack.c.l.b16 %v92
    %v1034 = vunpack.c.l.b16 %v93
    %v1035 = vunpack.c.l.b16 %v94
    %v1036 = vunpack.c.l.b16 %v95
    %v1037 = vunpack.c.l.b16 %v96
    %v1038 = vunpack.c.l.b16 %v97
    %v1039 = vunpack.c.l.b16 %v98
    %v1040 = vunpack.c.l.b16 %v99
    %v1041 = vunpack.c.l.b16 %v100
    %v1042 = vunpack.c.l.b16 %v101
    %v1043 = vunpack.c.l.b16 %v102
    %v1044 = vunpack.c.l.b16 %v103
    %v1045 = vunpack.c.l.b16 %v104
    %v1046 = vunpack.c.l.b16 %v105
    %v1047 = vunpack.c.l.b16 %v106
    %v1048 = vunpack.c.l.b16 %v107
    %v1049 = vunpack.c.l.b16 %v108
    %v1050 = vunpack.c.l.b16 %v109
    %v1051 = vunpack.c.l.b16 %v110
    %v1052 = vunpack.c.l.b16 %v111
    %v1053 = vunpack.c.l.b16 %v112
    %v1054 = vunpack.c.l.b16 %v113
    %v1055 = vunpack.c.l.b16 %v114
    %v1056 = vunpack.c.l.b16 %v115
    %v1057 = vunpack.c.l.b16 %v116
    %v1058 = vunpack.c.l.b16 %v117
    %v1059 = vunpack.c.l.b16 %v118
    %v1060 = vunpack.c.l.b16 %v119
    %v1061 = vunpack.c.l.b16 %v120
    %v1062 = vunpack.c.l.b16 %v121
    %v1063 = vunpack.c.l.b16 %v122
    %v1064 = vunpack.c.l.b16 %v123
    %v1065 = vunpack.c.l.b16 %v124
    %v1066 = vunpack.c.l.b16 %v125
    %v1067 = vunpack.c.l.b16 %v126
    %v1068 = vunpack.c.l.b16 %v127
    %v1069 = vunpack.c.l.b16 %v128
    %v1070 = vunpack.c.l.b16 %v129
    %v1071 = vunpack.c.l.b16 %v130
    %v1072 = vunpack.c.l.b16 %v131
    %v1073 = vunpack.c.l.b16 %v132
    %v1074 = vunpack.c.l.b16 %v133
    %v1075 = vunpack.c.l.b16 %v134
    %v1076 = vunpack.c.l.b16 %v135
    %v1077 = vunpack.c.l.b16 %v136
    %v1078 = vunpack.c.l.b16 %v137
    %v1079 = vunpack.c.l.b16 %v138
    %v1080 = vunpack.c.l.b16 %v139
    %v1081 = vunpack.c.l.b16 %v140
    %v1082 = vunpack.c.l.b16 %v141
    %v1083 = vunpack.c.l.b16 %v142
    %v1084 = vunpack.c.l.b16 %v143
    %v1085 = vunpack.c.l.b16 %v144
    %v1086 = vunpack.c.l.b16 %v145
    %v1087 = vunpack.c.l.b16 %v146
    %v1088 = vunpack.c.l.b16 %v147
    %v1089 = vunpack.c.l.b16 %v148
    %v1090 = vunpack.c.l.b16 %v149
    %v1091 = vunpack.c.l.b16 %v150
    %v1092 = vunpack.c.l.b16 %v151
    %v1093 = vunpack.c.l.b16 %v152
    %v1094 = vunpack.c.l.b16 %v153
    %v1095 = vunpack.c.l.b16 %v154
    %v1096 = vunpack.c.l.b16 %v155
    %v1097 = vunpack.c.l.b16 %v156
    %v1098 = vunpack.c.l.b16 %v157
    %v1099 = vunpack.c.l.b16 %v158
    %v1100 = vunpack.c.l.b16 %v159
    %v1101 = vunpack.c.l.b16 %v160
    %v1102 = vunpack.c.l.b16 %v161
    %v1103 = vunpack.c.l.b16 %v162
    %v1104 = vunpack.c.l.b16 %v163
    %v1105 = vunpack.c.l.b16 %v164
    %v1106 = vunpack.c.l.b16 %v165
    %v1107 = vunpack.c.l.b16 %v166
    %v1108 = vunpack.c.l.b16 %v167
    %v1109 = vunpack.c.l.b16 %v168
    %v1110 = vunpack.c.l.b16 %v169
    %v1111 = vunpack.c.l.b16 %v170
    %v1112 = vunpack.c.l.b16 %v171
    %v1113 = vunpack.c.l.b16 %v172
    %v1114 = vunpack.c.l.b16 %v173
    %v1115 = vunpack.c.l.b16 %v174
    %v1116 = vunpack.c.l.b16 %v175
    %v1117 = vunpack.c.l.b16 %v176
    %v1118 = vunpack.c.l.b16 %v177
    %v1119 = vunpack.c.l.b16 %v178
    %v1120 = vpack.c.b16 %v1025, %v1024
    %v1121 = vpack.c.b16 %v1027, %v1026
    %v1122 = vpack.c.b16 %v1029, %v1028
    %v1123 = vpack.c.b16 %v1031, %v1030
    %v1124 = vpack.c.b16 %v1033, %v1032
    %v1125 = vpack.c.b16 %v1035, %v1034
    %v1126 = vpack.c.b16 %v1037, %v1036
    %v1127 = vpack.c.b16 %v1039, %v1038
    %v1128 = vpack.c.b16 %v1041, %v1040
    %v1129 = vpack.c.b16 %v1043, %v1042
    %v1130 = vpack.c.b16 %v1045, %v1044
    %v1131 = vpack.c.b16 %v1047, %v1046
    %v1132 = vpack.c.b16 %v1049, %v1048
    %v1133 = vpack.c.b16 %v1051, %v1050
    %v1134 = vpack.c.b16 %v1053, %v1052
    %v1135 = vpack.c.b16 %v1055, %v1054
    %v1136 = vpack.c.b16 %v1057, %v1056
    %v1137 = vpack.c.b16 %v1059, %v1058
    %v1138 = vpack.c.b16 %v1061, %v1060
    %v1139 = vpack.c.b16 %v1063, %v1062
    %v1140 = vpack.c.b16 %v1065, %v1064
    %v1141 = vpack.c.b16 %v1067, %v1066
    %v1142 = vpack.c.b16 %v1069, %v1068
    %v1143 = vpack.c.b16 %v1071, %v1070
    %v1144 = vpack.c.b16 %v1073, %v1072
    %v1145 = vpack.c.b16 %v1075, %v1074
    %v1146 = vpack.c.b16 %v1077, %v1076
    %v1147 = vpack.c.b16 %v1079, %v1078
    %v1148 = vpack.c.b16 %v1081, %v1080
    %v1149 = vpack.c.b16 %v1083, %v1082
    %v1150 = vpack.c.b16 %v1085, %v1084
    %v1151 = vpack.c.b16 %v1087, %v1086
    %v1152 = vpack.c.b16 %v1089, %v1088
    %v1153 = vpack.c.b16 %v1091, %v1090
    %v1154 = vpack.c.b16 %v1093, %v1092
    %v1155 = vpack.c.b16 %v1095, %v1094
    %v1156 = vpack.c.b16 %v1097, %v1096
    %v1157 = vpack.c.b16 %v1099, %v1098
    %v1158 = vpack.c.b16 %v1101, %v1100
    %v1159 = vpack.c.b16 %v1103, %v1102
    %v1160 = vpack.c.b16 %v1105, %v1104
    %v1161 = vpack.c.b16 %v1107, %v1106
    %v1162 = vpack.c.b16 %v1109, %v1108
    %v1163 = vpack.c.b16 %v1111, %v1110
    %v1164 = vpack.c.b16 %v1113, %v1112
    %v1165 = vpack.c.b16 %v1115, %v1114
    %v1166 = vpack.c.b16 %v1117, %v1116
    %v1167 = vpack.c.b16 %v1119, %v1118
    %1216 = vmatprep.subr.bf16.mxu0 0
    %1217 = vmatpush1.bf16.msra.mxu0 %v1127
    %1218 = vmatprep.subr.bf16.mxu0 0
    %1219 = vmatpush1.bf16.msra.mxu0 %v1126
    %1220 = vmatprep.subr.bf16.mxu0 0
    %1221 = vmatpush1.bf16.msra.mxu0 %v1125
    %1222 = vmatprep.subr.bf16.mxu0 0
    %1223 = vmatpush1.bf16.msra.mxu0 %v1124
    %1224 = vmatprep.subr.bf16.mxu0 0
    %1225 = vmatpush1.bf16.msra.mxu0 %v1123
    %1226 = vmatprep.subr.bf16.mxu0 0
    %1227 = vmatpush1.bf16.msra.mxu0 %v1122
    %1228 = vmatprep.subr.bf16.mxu0 0
    %1229 = vmatpush1.bf16.msra.mxu0 %v1121
    %1230 = vmatprep.subr.bf16.mxu0 0
    %1231 = vmatpush1.bf16.msra.mxu0 %v1120
    %1232 = vmatprep.subr.bf16.mxu0 0
    %1233 = vmatpush2.bf16.msra.mxu0 %v1135
    %1234 = vmatprep.subr.bf16.mxu0 0
    %1235 = vmatpush2.bf16.msra.mxu0 %v1134
    %1236 = vmatprep.subr.bf16.mxu0 0
    %1237 = vmatpush2.bf16.msra.mxu0 %v1133
    %1238 = vmatprep.subr.bf16.mxu0 0
    %1239 = vmatpush2.bf16.msra.mxu0 %v1132
    %1240 = vmatprep.subr.bf16.mxu0 0
    %1241 = vmatpush2.bf16.msra.mxu0 %v1131
    %1242 = vmatprep.subr.bf16.mxu0 0
    %1243 = vmatpush2.bf16.msra.mxu0 %v1130
    %1244 = vmatprep.subr.bf16.mxu0 0
    %1245 = vmatpush2.bf16.msra.mxu0 %v1129
    %1246 = vmatprep.subr.bf16.mxu0 0
    %1247 = vmatpush2.bf16.msra.mxu0 %v1128
    %1248 = vmatprep.mubr.bf16.mxu0 %v917
    %1249 = vmatmul.mubr.bf16.gmra.mxu0 %v916
    %v1250 = vpop.f32.mrf.mxu0
    %v1251 = vadd.f32 %v892, %v1250
    %v1252 = vpop.f32.mrf.mxu0
    %v1253 = vpop.f32.mrf.mxu0
    %v1254 = vadd.f32 %v895, %v1253
    %v1255 = vpop.f32.mrf.mxu0
    %1256 = vdwg.mxu0
    %1257 = vmatprep.subr.bf16.mxu0 0
    %1258 = vmatpush1.bf16.msra.mxu0 %v1143
    %1259 = vmatprep.subr.bf16.mxu0 0
    %1260 = vmatpush1.bf16.msra.mxu0 %v1142
    %1261 = vmatprep.subr.bf16.mxu0 0
    %1262 = vmatpush1.bf16.msra.mxu0 %v1141
    %1263 = vmatprep.subr.bf16.mxu0 0
    %1264 = vmatpush1.bf16.msra.mxu0 %v1140
    %1265 = vmatprep.subr.bf16.mxu0 0
    %1266 = vmatpush1.bf16.msra.mxu0 %v1139
    %1267 = vmatprep.subr.bf16.mxu0 0
    %1268 = vmatpush1.bf16.msra.mxu0 %v1138
    %1269 = vmatprep.subr.bf16.mxu0 0
    %1270 = vmatpush1.bf16.msra.mxu0 %v1137
    %1271 = vmatprep.subr.bf16.mxu0 0
    %1272 = vmatpush1.bf16.msra.mxu0 %v1136
    %1273 = vmatprep.subr.bf16.mxu0 0
    %1274 = vmatpush2.bf16.msra.mxu0 %v1151
    %1275 = vmatprep.subr.bf16.mxu0 0
    %1276 = vmatpush2.bf16.msra.mxu0 %v1150
    %1277 = vmatprep.subr.bf16.mxu0 0
    %1278 = vmatpush2.bf16.msra.mxu0 %v1149
    %1279 = vmatprep.subr.bf16.mxu0 0
    %1280 = vmatpush2.bf16.msra.mxu0 %v1148
    %1281 = vmatprep.subr.bf16.mxu0 0
    %1282 = vmatpush2.bf16.msra.mxu0 %v1147
    %1283 = vmatprep.subr.bf16.mxu0 0
    %1284 = vmatpush2.bf16.msra.mxu0 %v1146
    %1285 = vmatprep.subr.bf16.mxu0 0
    %1286 = vmatpush2.bf16.msra.mxu0 %v1145
    %1287 = vmatprep.subr.bf16.mxu0 0
    %1288 = vmatpush2.bf16.msra.mxu0 %v1144
    %1289 = vmatprep.mubr.bf16.mxu0 %v919
    %1290 = vmatmul.mubr.bf16.gmra.mxu0 %v918
    %v1291 = vpop.f32.mrf.mxu0
    %v1292 = vadd.f32 %v1251, %v1291
    %v1293 = vpop.f32.mrf.mxu0
    %v1294 = vpop.f32.mrf.mxu0
    %v1295 = vadd.f32 %v1254, %v1294
    %v1296 = vpop.f32.mrf.mxu0
    %1297 = vdwg.mxu0
    %1298 = vmatprep.subr.bf16.mxu0 0
    %1299 = vmatpush1.bf16.msra.mxu0 %v1159
    %1300 = vmatprep.subr.bf16.mxu0 0
    %1301 = vmatpush1.bf16.msra.mxu0 %v1158
    %1302 = vmatprep.subr.bf16.mxu0 0
    %1303 = vmatpush1.bf16.msra.mxu0 %v1157
    %1304 = vmatprep.subr.bf16.mxu0 0
    %1305 = vmatpush1.bf16.msra.mxu0 %v1156
    %1306 = vmatprep.subr.bf16.mxu0 0
    %1307 = vmatpush1.bf16.msra.mxu0 %v1155
    %1308 = vmatprep.subr.bf16.mxu0 0
    %1309 = vmatpush1.bf16.msra.mxu0 %v1154
    %1310 = vmatprep.subr.bf16.mxu0 0
    %1311 = vmatpush1.bf16.msra.mxu0 %v1153
    %1312 = vmatprep.subr.bf16.mxu0 0
    %1313 = vmatpush1.bf16.msra.mxu0 %v1152
    %1314 = vmatprep.subr.bf16.mxu0 0
    %1315 = vmatpush2.bf16.msra.mxu0 %v1167
    %1316 = vmatprep.subr.bf16.mxu0 0
    %1317 = vmatpush2.bf16.msra.mxu0 %v1166
    %1318 = vmatprep.subr.bf16.mxu0 0
    %1319 = vmatpush2.bf16.msra.mxu0 %v1165
    %1320 = vmatprep.subr.bf16.mxu0 0
    %1321 = vmatpush2.bf16.msra.mxu0 %v1164
    %1322 = vmatprep.subr.bf16.mxu0 0
    %1323 = vmatpush2.bf16.msra.mxu0 %v1163
    %1324 = vmatprep.subr.bf16.mxu0 0
    %1325 = vmatpush2.bf16.msra.mxu0 %v1162
    %1326 = vmatprep.subr.bf16.mxu0 0
    %1327 = vmatpush2.bf16.msra.mxu0 %v1161
    %1328 = vmatprep.subr.bf16.mxu0 0
    %1329 = vmatpush2.bf16.msra.mxu0 %v1160
    %1330 = vmatprep.mubr.bf16.mxu0 %v921
    %1331 = vmatmul.mubr.bf16.gmra.mxu0 %v920
    %v1332 = vpop.f32.mrf.mxu0
    %v1333 = vadd.f32 %v1292, %v1332
    %v1334 = vpop.f32.mrf.mxu0
    %v1335 = vpop.f32.mrf.mxu0
    %v1336 = vadd.f32 %v1295, %v1335
    %v1337 = vpop.f32.mrf.mxu0
    %1338 = vdwg.mxu0
    %v1339 = vld [vmem:[%s4] sm:$0x1]
    %v1341 = vlaneseq
    %v1342 = vshrl.u32 %v1341, 7
    %v1343 = vsub.s32 0, %v1342
    %v1344 = vrot.slane %v1339, %v1343
    %v1346 = vadd.f32 %v1333, %v1344
    %v1347 = vadd.f32 %v1336, %v1344
    %v1348 = vpack.c.bf16 %v1347, %v1346
    %v1350 = vunpack.c.l.b16 %v1348
    %v1351 = vunpack.c.h.b16 %v1348
    %v1352 = vpack.c.b16 %v1350, %v1350
    %v1353 = vpack.c.b16 %v1351, %v1351
    %1356 = vst [vmem:[#allocation10] sm:$0xf] %v1352
    %1357 = vst [vmem:[#allocation10 + $0x4] sm:$0xf] %v1353
    // Predicated region
    $region38: #{tpu_custom_call.1} parent=1 // pred_check
      _
    $region39: #{tpu_custom_call.1} parent=1 // pred_check_branch
      %1359 = sbr.rel (0) target = $region41
    $region40: #{tpu_custom_call.1} parent=1 // pred_region
      %s1361 = ssub.s32 128, 128
      %1362 = vsyncadd [#allocation4], %s1361
      %s1363 = sshll.u32 [#allocation10], 4
      %s1364 = int_to_ptr.vmem [resolvable:$true] %s1363
      %1369 = dma.vmem_to_hbm [thread:$0]  %s1364, 128, %s5, [#allocation4], 64, 64, 4
    $region41: #{tpu_custom_call.1} parent=1 // pred_fallthru
      _
    // Predicated region
    $region42: #{tpu_custom_call.1} parent=1 // pred_check
      _
    $region43: #{tpu_custom_call.1} parent=1 // pred_check_branch
      %1371 = sbr.rel (0) target = $region45
    $region44: #{tpu_custom_call.1} parent=1 // pred_region
      %1372 = dma.done [#allocation4], 128
    $region45: #{tpu_custom_call.1} parent=1 // pred_fallthru
      _
    %1373 = vsyncpa [#allocation3], 1
    %1374 = vsyncpa [#allocation6], 1
    %1375 = vsyncpa [#allocation9], 1
    %1376 = vsyncpa [#allocation4], 1

</llo_original>
